<compile_context>
chip_gen: v7x
topology: tpu7x:2x2x1
jax: 0.10.0
libtpu: 0.0.40
codegen_flags: <defaults>
</compile_context>

<pallas_src>
import functools

import jax
import jax.numpy as jnp
import numpy as np
from jax.experimental import pallas as pl
from jax.experimental.pallas import tpu as pltpu


def _round_up(x, m):
    return (x + m - 1) // m * m


# --------------------------------------------------------------------------
# Kernel 1: one propagation layer, block-sparse  E_out = A_norm @ E
#   outputs: E_out (bf16, next layer's input) and sum_out = sum_in + E_out (f32)
# --------------------------------------------------------------------------
def _spmm_kernel(blk_ref, cnt_ref,                    # scalar prefetch (SMEM)
                 a_ref, e_ref, sum_in_ref,            # inputs (VMEM tiles)
                 e_out_ref, sum_out_ref,              # outputs (row-resident)
                 acc_ref):                            # f32 accumulator scratch
    i = pl.program_id(0)
    s = pl.program_id(1)

    @pl.when(s == 0)
    def _():
        acc_ref[...] = jnp.zeros_like(acc_ref)

    # Skip compute for padded entries of this row tile's nonzero-block list.
    @pl.when(s < cnt_ref[i])
    def _():
        # bf16 x bf16 on the MXU, f32 accumulation in VMEM scratch.
        acc_ref[...] += jnp.dot(a_ref[...], e_ref[...],
                                preferred_element_type=jnp.float32)

    @pl.when(s == pl.num_programs(1) - 1)
    def _():
        e_out_ref[...] = acc_ref[...].astype(jnp.bfloat16)   # next layer input
        sum_out_ref[...] = sum_in_ref[...] + acc_ref[...]    # fused layer sum


def _adj_layer(adj_bf16, e_bf16, sum_f32, blk, cnt, nnz_s, nnz_total,
               *, tile_m, tile_k):
    """One block-sparse A @ E layer.  blk: flattened (n_row_tiles * nnz_s)
    nonzero-block indices, cnt: per-row-tile nonzero-block count."""
    n_pad, d = sum_f32.shape
    S = nnz_s
    grid = (n_pad // tile_m, S)

    a_map = lambda i, s, blk_r, cnt_r: (i, blk_r[i * S + s])
    e_map = lambda i, s, blk_r, cnt_r: (blk_r[i * S + s], 0)
    row_map = lambda i, s, blk_r, cnt_r: (i, 0)

    flops = 2 * nnz_total * tile_m * tile_k * d
    bytes_accessed = (nnz_total * (tile_m * tile_k * 2 + tile_k * d * 2)  # A + E panels (bf16)
                      + n_pad * d * (4 + 4 + 2))                          # sum in/out + E_out

    # TODO(synk): on v7x, consider fp8(e4m3) for A (values in (0,1], single
    # static scale) to halve the dominant HBM stream; validate gradients first.
    return pl.pallas_call(
        _spmm_kernel,
        grid_spec=pltpu.PrefetchScalarGridSpec(
            num_scalar_prefetch=2,
            grid=grid,
            in_specs=[
                pl.BlockSpec((tile_m, tile_k), a_map),   # nonzero A block (bf16)
                pl.BlockSpec((tile_k, d), e_map),        # matching E k-panel (bf16)
                pl.BlockSpec((tile_m, d), row_map),      # running layer sum (f32)
            ],
            out_specs=[
                pl.BlockSpec((tile_m, d), row_map),      # E_{l+1} (bf16)
                pl.BlockSpec((tile_m, d), row_map),      # sum + E_{l+1} (f32)
            ],
            scratch_shapes=[pltpu.VMEM((tile_m, d), jnp.float32)],
        ),
        out_shape=(
            jax.ShapeDtypeStruct((n_pad, d), jnp.bfloat16),
            jax.ShapeDtypeStruct((n_pad, d), jnp.float32),
        ),
        compiler_params=pltpu.CompilerParams(
            dimension_semantics=("parallel", "arbitrary"),
            vmem_limit_bytes=32 * 1024 * 1024,      # <= 50% of v7x's 64 MiB VMEM
        ),
        cost_estimate=pl.CostEstimate(
            flops=int(flops), transcendentals=0,
            bytes_accessed=int(bytes_accessed)),
    )(blk, cnt, adj_bf16, e_bf16, sum_f32)


def _build_block_structure(adj_np, n_pad, tile_m, tile_k):
    """Host-side: pad A and build the per-row-tile nonzero (tile_m x tile_k)
    block lists (padded with the last valid index so duplicates skip re-DMA)."""
    n_total = adj_np.shape[0]
    A = np.zeros((n_pad, n_pad), np.float32)
    A[:n_total, :n_total] = adj_np
    nm, nk = n_pad // tile_m, n_pad // tile_k
    nz = (A.reshape(nm, tile_m, nk, tile_k) != 0).any(axis=(1, 3))
    cnt = nz.sum(axis=1).astype(np.int32)
    S = max(int(cnt.max()), 1)
    blk = np.zeros((nm, S), np.int32)
    for i in range(nm):
        idx = np.nonzero(nz[i])[0].astype(np.int32)
        if idx.size == 0:
            continue                       # blk row stays 0; cnt[i]==0 masks compute
        blk[i, :idx.size] = idx
        blk[i, idx.size:] = idx[-1]        # repeat last valid -> no extra DMA
    return A, blk.reshape(-1), cnt, S, int(cnt.sum())


def lightgcn_propagate(adj_bf16, emb_pad_f32, blk, cnt, nnz_s, nnz_total,
                       num_layers, *, tile_m, tile_k):
    """mean over [E0, A E0, ..., A^L E0]; one block-sparse Pallas matmul per
    layer (layers have a serial dependency), layer sum fused into the kernel."""
    e_bf = emb_pad_f32.astype(jnp.bfloat16)
    acc = emb_pad_f32
    for _ in range(num_layers):
        e_bf, acc = _adj_layer(adj_bf16, e_bf, acc, blk, cnt, nnz_s, nnz_total,
                               tile_m=tile_m, tile_k=tile_k)
    return acc / float(num_layers + 1)


# --------------------------------------------------------------------------
# Kernel 2: batch-tiled BPR loss with fused, 8-row-batched gathers
# --------------------------------------------------------------------------
def _bpr_kernel(u_idx_ref, p_idx_ref, n_idx_ref,   # scalar prefetch (SMEM)
                table_ref,                          # (N_pad, D) latent table (VMEM)
                out_ref,                            # (1, 1) resident sum/mean
                u_buf, p_buf, n_buf,                # VMEM scratch
                *, batch, n_neg, gamma):
    tb, d = u_buf.shape
    i = pl.program_id(0)
    base = i * tb

    # ---- fused gather: 8 rows per group; index loads hoisted, one full
    # (8, d) vreg-dense store per buffer per group (statically unrolled). ----
    for g in range(tb // 8):
        r0 = base + g * 8
        u_ids = [u_idx_ref[r0 + j] for j in range(8)]
        p_ids = [p_idx_ref[r0 + j] for j in range(8)]
        n_ids = [[n_idx_ref[(r0 + j) * n_neg + k] for k in range(n_neg)]
                 for j in range(8)]
        u_blk = jnp.concatenate(
            [table_ref[pl.ds(u_ids[j], 1), :] for j in range(8)], axis=0)
        p_blk = jnp.concatenate(
            [table_ref[pl.ds(p_ids[j], 1), :] for j in range(8)], axis=0)
        u_buf[g * 8:(g + 1) * 8, :] = u_blk
        p_buf[g * 8:(g + 1) * 8, :] = p_blk
        for k in range(n_neg):
            n_blk = jnp.concatenate(
                [table_ref[pl.ds(n_ids[j][k], 1), :] for j in range(8)], axis=0)
            n_buf[g * 8:(g + 1) * 8, k * d:(k + 1) * d] = n_blk

    # ---- scoring ------------------------------------------------------------
    u = u_buf[...]
    p = p_buf[...]
    pos = jnp.sum(u * p, axis=-1, keepdims=True)                 # (tb, 1)

    rows = jax.lax.broadcasted_iota(jnp.int32, (tb, 1), 0) + base
    mask = (rows < batch).astype(jnp.float32)                    # zero padded rows

    tile_sum = jnp.zeros((1, 1), jnp.float32)
    for k in range(n_neg):                                        # n_neg small/static
        neg = jnp.sum(u * n_buf[:, k * d:(k + 1) * d], axis=-1, keepdims=True)
        loss = -jnp.log(gamma + jax.nn.sigmoid(pos - neg)) * mask
        tile_sum = tile_sum + jnp.sum(loss)

    # ---- global-sum accumulation, mean at the last grid step ---------------
    @pl.when(i == 0)
    def _():
        out_ref[...] = jnp.zeros_like(out_ref)

    # NOTE: this resident (1,1) accumulator requires the grid axis to stay
    # "arbitrary" (sequential); flipping it to "parallel" would be a race.
    out_ref[...] += tile_sum

    @pl.when(i == pl.num_programs(0) - 1)
    def _():
        out_ref[...] = out_ref[...] / float(batch * n_neg)


def bpr_loss(latent_table, user_idx, pos_idx, neg_idx, *, tb=None, gamma=1e-10):
    """latent_table: (N_pad, D) f32; indices are rows into that table."""
    batch = int(user_idx.shape[0])
    n_neg = int(neg_idx.shape[1])
    n_pad, d = latent_table.shape
    if tb is None:
        tb = min(256, _round_up(batch, 8))      # realistic default, small-batch safe
    tb = _round_up(tb, 8)
    b_pad = _round_up(batch, tb)
    pad = b_pad - batch
    u = jnp.pad(user_idx.astype(jnp.int32), (0, pad))
    p = jnp.pad(pos_idx.astype(jnp.int32), (0, pad))
    n = jnp.pad(neg_idx.astype(jnp.int32), ((0, pad), (0, 0))).reshape(-1)

    kernel = functools.partial(_bpr_kernel, batch=batch, n_neg=n_neg, gamma=gamma)
    # TODO(synk): for graphs whose (n_pad, d) latent table cannot sit in v7x's
    # 64 MiB VMEM, switch this input to memory_space=pl.ANY and double-buffer
    # per-tile row DMAs instead of keeping the whole table VMEM-resident.
    out = pl.pallas_call(
        kernel,
        grid_spec=pltpu.PrefetchScalarGridSpec(
            num_scalar_prefetch=3,
            grid=(b_pad // tb,),
            in_specs=[
                # latent table resident in VMEM across all batch tiles
                pl.BlockSpec((n_pad, d), lambda i, u_r, p_r, n_r: (0, 0)),
            ],
            out_specs=pl.BlockSpec((1, 1), lambda i, u_r, p_r, n_r: (0, 0)),
            scratch_shapes=[
                pltpu.VMEM((tb, d), jnp.float32),           # gathered users
                pltpu.VMEM((tb, d), jnp.float32),           # gathered pos items
                pltpu.VMEM((tb, n_neg * d), jnp.float32),   # gathered neg items
            ],
        ),
        out_shape=jax.ShapeDtypeStruct((1, 1), jnp.float32),
        compiler_params=pltpu.CompilerParams(
            dimension_semantics=("arbitrary",),   # MUST stay sequential (see kernel)
        ),
    )(u, p, n, latent_table)
    return out[0, 0]


# --------------------------------------------------------------------------
# Glue: adjacency normalization (dense equivalent of the scipy path) + forward
# --------------------------------------------------------------------------
def normalize_adjacency_matrix(interaction, n_users, n_items, eps=1e-7):
    """Dense D^{-1/2} [[0, R],[R^T, 0]] D^{-1/2} (degrees from nnz counts,
    matching the torch module for a binary interaction matrix). Returns numpy."""
    N = n_users + n_items
    A = np.zeros((N, N), dtype=np.float64)
    A[:n_users, n_users:] = interaction
    A[n_users:, :n_users] = interaction.T
    deg = (A > 0).sum(axis=1).astype(np.float64) + eps
    d_inv_sqrt = np.power(deg, -0.5)
    return (d_inv_sqrt[:, None] * A * d_inv_sqrt[None, :]).astype(np.float32)


def _choose_tiles(n_total):
    # Large-graph defaults (decoupled A block of 512x512 bf16 = 512 KiB per
    # buffer); shrink only for tiny graphs so the grid stays non-degenerate.
    tile_m, tile_k = 512, 512
    while tile_m > 128 and n_total <= tile_m:
        tile_m //= 2
    while tile_k > 128 and n_total <= tile_k:
        tile_k //= 2
    return tile_m, tile_k


def lightgcn_forward(params, norm_adj_np, users, items, neg_items,
                     num_layers, n_users, *, bpr_tile=None, gamma=1e-10):
    n_items_, d_model = params["item_emb"].shape
    n_total = n_users + n_items_

    d_pad = 128                              # lane-dense; do not pad beyond 128
    assert d_model <= d_pad
    tile_m, tile_k = _choose_tiles(n_total)
    n_pad = _round_up(n_total, max(tile_m, tile_k))

    # host-side block-sparsity analysis of the normalized adjacency
    adj_pad, blk, cnt, nnz_s, nnz_total = _build_block_structure(
        np.asarray(norm_adj_np, np.float32), n_pad, tile_m, tile_k)
    adj_bf16 = jnp.asarray(adj_pad, jnp.bfloat16)   # bf16 A stream, f32 MXU acc
    blk = jnp.asarray(blk)
    cnt = jnp.asarray(cnt)

    all_emb = jnp.concatenate([params["user_emb"], params["item_emb"]], axis=0)
    emb_pad = jnp.zeros((n_pad, d_pad), jnp.float32).at[:n_total, :d_model].set(all_emb)

    latent = lightgcn_propagate(adj_bf16, emb_pad, blk, cnt, nnz_s, nnz_total,
                                num_layers, tile_m=tile_m, tile_k=tile_k)

    # row indices into the concatenated (user | item | zero-pad) latent table
    u_idx = users.astype(jnp.int32)
    p_idx = items.astype(jnp.int32) + n_users
    n_idx = neg_items.astype(jnp.int32) + n_users
    return bpr_loss(latent, u_idx, p_idx, n_idx, tb=bpr_tile, gamma=gamma)


def lightgcn_forward_ref(params, norm_adj_np, users, items, neg_items,
                         num_layers, n_users, gamma=1e-10, emulate_bf16=False):
    """Pure-JAX reference. emulate_bf16=True mirrors the kernel's precision
    (bf16 matmul operands, f32 accumulation, bf16 E between layers)."""
    a = jnp.asarray(norm_adj_np)
    e = jnp.concatenate([params["user_emb"], params["item_emb"]], axis=0)
    acc = e
    if emulate_bf16:
        a_bf = a.astype(jnp.bfloat16)
        cur = e.astype(jnp.bfloat16)
        for _ in range(num_layers):
            new = jnp.dot(a_bf, cur, preferred_element_type=jnp.float32)
            acc = acc + new
            cur = new.astype(jnp.bfloat16)
    else:
        for _ in range(num_layers):
            e = jnp.dot(a, e, precision=jax.lax.Precision.HIGHEST)
            acc = acc + e
    all_latent = acc / (num_layers + 1)
    u = all_latent[:n_users][users]
    p = all_latent[n_users:][items]
    n = all_latent[n_users:][neg_items]
    pos = jnp.sum(u * p, axis=-1, keepdims=True)
    neg = jnp.sum(u[:, None, :] * n, axis=-1)
    return jnp.mean(-jnp.log(gamma + jax.nn.sigmoid(pos - neg)))


# --------------------------------------------------------------------------
# Main
# --------------------------------------------------------------------------
if __name__ == "__main__":
    n_users, n_items, d_model = 72, 88, 32      # N = 160 -> padded 256, 2 row tiles
    num_layers = 3
    batch, n_neg = 96, 4                         # bpr_tile=64 -> 2 batch tiles (+mask)

    key = jax.random.PRNGKey(0)
    k_inter, k_uemb, k_iemb, k_u, k_i, k_n = jax.random.split(key, 6)

    # deterministic binary interaction matrix (values == 1.0)
    interaction = np.asarray(
        jax.random.bernoulli(k_inter, p=0.15, shape=(n_users, n_items))
    ).astype(np.float32)

    norm_adj = normalize_adjacency_matrix(interaction, n_users, n_items)

    # nn.init.normal_ on both embedding tables (standard normal)
    params = {
        "user_emb": jax.random.normal(k_uemb, (n_users, d_model), jnp.float32),
        "item_emb": jax.random.normal(k_iemb, (n_items, d_model), jnp.float32),
    }

    users = jax.random.randint(k_u, (batch,), 0, n_users)
    items = jax.random.randint(k_i, (batch,), 0, n_items)
    neg_items = jax.random.randint(k_n, (batch, n_neg), 0, n_items)

    loss = lightgcn_forward(params, norm_adj, users, items, neg_items,
                            num_layers, n_users, bpr_tile=64)
    loss = float(jax.block_until_ready(loss))

    # tight check vs. a reference emulating the kernel's bf16/f32 precision
    ref_bf16 = float(lightgcn_forward_ref(params, norm_adj, users, items,
                                          neg_items, num_layers, n_users,
                                          emulate_bf16=True))
    np.testing.assert_allclose(loss, ref_bf16, rtol=2e-3, atol=2e-3)

    # loose check vs. the full-f32 module semantics
    ref_f32 = float(lightgcn_forward_ref(params, norm_adj, users, items,
                                         neg_items, num_layers, n_users))
    np.testing.assert_allclose(loss, ref_f32, rtol=5e-2, atol=5e-2)

    print("KERNEL_OK")
</pallas_src>

<mosaic_0001>
module attributes {stable_mosaic.version = 11 : i64} {
  func.func @_spmm_kernel(%arg0: i32, %arg1: i32, %arg2: memref<4xi32, #tpu.memory_space<smem>>, %arg3: memref<2xi32, #tpu.memory_space<smem>>, %arg4: memref<128x128xbf16, #tpu.memory_space<vmem>>, %arg5: memref<128x128xbf16, #tpu.memory_space<vmem>>, %arg6: memref<128x128xf32, #tpu.memory_space<vmem>>, %arg7: memref<128x128xbf16, #tpu.memory_space<vmem>>, %arg8: memref<128x128xf32, #tpu.memory_space<vmem>>, %arg9: memref<128x128xf32, #tpu.memory_space<vmem>>) attributes {dimension_semantics = [#tpu.dimension_semantics<parallel>, #tpu.dimension_semantics<arbitrary>], iteration_bounds = array<i64: 2, 2>, scalar_prefetch = 2 : i64, scratch_operands = 1 : i64, tpu.core_type = #tpu.core_type<tc>, window_params = [{transform_indices = @transform_0, window_bounds = array<i64: 128, 128>}, {transform_indices = @transform_1, window_bounds = array<i64: 128, 128>}, {transform_indices = @transform_2, window_bounds = array<i64: 128, 128>}, {transform_indices = @transform_3, window_bounds = array<i64: 128, 128>}, {transform_indices = @transform_4, window_bounds = array<i64: 128, 128>}]} {
    %c0_i32 = arith.constant 0 : i32
    %0 = arith.cmpi eq, %arg1, %c0_i32 : i32
    %1 = arith.extui %0 : i1 to i32
    %c0_i32_0 = arith.constant 0 : i32
    %2 = arith.cmpi ne, %1, %c0_i32_0 : i32
    scf.if %2 {
      %cst = arith.constant 0.000000e+00 : f32
      %11 = vector.broadcast %cst : f32 to vector<128x128xf32>
      %c0 = arith.constant 0 : index
      %c0_3 = arith.constant 0 : index
      %12 = vector.load %arg9[%c0, %c0_3] : memref<128x128xf32, #tpu.memory_space<vmem>>, vector<128x128xf32>
      tpu.vector_store %arg9[%c0, %c0_3], %11 {strides = array<i32>} : memref<128x128xf32, #tpu.memory_space<vmem>>, vector<128x128xf32>,
    } else {
    }
    %3 = arith.index_cast %arg0 : i32 to index
    %4 = memref.load %arg3[%3] : memref<2xi32, #tpu.memory_space<smem>>
    %5 = arith.cmpi slt, %arg1, %4 : i32
    %6 = arith.extui %5 : i1 to i32
    %c0_i32_1 = arith.constant 0 : i32
    %7 = arith.cmpi ne, %6, %c0_i32_1 : i32
    scf.if %7 {
      %c0 = arith.constant 0 : index
      %c0_3 = arith.constant 0 : index
      %11 = vector.load %arg9[%c0, %c0_3] : memref<128x128xf32, #tpu.memory_space<vmem>>, vector<128x128xf32>
      %c0_4 = arith.constant 0 : index
      %c0_5 = arith.constant 0 : index
      %12 = vector.load %arg4[%c0_4, %c0_5] : memref<128x128xbf16, #tpu.memory_space<vmem>>, vector<128x128xbf16>
      %c0_6 = arith.constant 0 : index
      %c0_7 = arith.constant 0 : index
      %13 = vector.load %arg5[%c0_6, %c0_7] : memref<128x128xbf16, #tpu.memory_space<vmem>>, vector<128x128xbf16>
      %cst = arith.constant dense<0.000000e+00> : vector<128x128xf32>
      %14 = tpu.matmul %12, %13, %cst {dimension_numbers = #tpu.dot_dimension_numbers<[1], [0], [0], [1], [0, 0, 1, 1], [], []>} : vector<128x128xbf16>, vector<128x128xbf16>, vector<128x128xf32> -> vector<128x128xf32>
      %15 = arith.addf %11, %14 : vector<128x128xf32>
      %c0_8 = arith.constant 0 : index
      %c0_9 = arith.constant 0 : index
      %16 = vector.load %arg9[%c0_8, %c0_9] : memref<128x128xf32, #tpu.memory_space<vmem>>, vector<128x128xf32>
      tpu.vector_store %arg9[%c0_8, %c0_9], %15 {strides = array<i32>} : memref<128x128xf32, #tpu.memory_space<vmem>>, vector<128x128xf32>,
    } else {
    }
    %c1_i32 = arith.constant 1 : i32
    %8 = arith.cmpi eq, %arg1, %c1_i32 : i32
    %9 = arith.extui %8 : i1 to i32
    %c0_i32_2 = arith.constant 0 : i32
    %10 = arith.cmpi ne, %9, %c0_i32_2 : i32
    scf.if %10 {
      %c0 = arith.constant 0 : index
      %c0_3 = arith.constant 0 : index
      %11 = vector.load %arg9[%c0, %c0_3] : memref<128x128xf32, #tpu.memory_space<vmem>>, vector<128x128xf32>
      %12 = arith.truncf %11 : vector<128x128xf32> to vector<128x128xbf16>
      %c0_4 = arith.constant 0 : index
      %c0_5 = arith.constant 0 : index
      %13 = vector.load %arg7[%c0_4, %c0_5] : memref<128x128xbf16, #tpu.memory_space<vmem>>, vector<128x128xbf16>
      tpu.vector_store %arg7[%c0_4, %c0_5], %12 {strides = array<i32>} : memref<128x128xbf16, #tpu.memory_space<vmem>>, vector<128x128xbf16>,
      %c0_6 = arith.constant 0 : index
      %c0_7 = arith.constant 0 : index
      %14 = vector.load %arg6[%c0_6, %c0_7] : memref<128x128xf32, #tpu.memory_space<vmem>>, vector<128x128xf32>
      %c0_8 = arith.constant 0 : index
      %c0_9 = arith.constant 0 : index
      %15 = vector.load %arg9[%c0_8, %c0_9] : memref<128x128xf32, #tpu.memory_space<vmem>>, vector<128x128xf32>
      %16 = arith.addf %14, %15 : vector<128x128xf32>
      %c0_10 = arith.constant 0 : index
      %c0_11 = arith.constant 0 : index
      %17 = vector.load %arg8[%c0_10, %c0_11] : memref<128x128xf32, #tpu.memory_space<vmem>>, vector<128x128xf32>
      tpu.vector_store %arg8[%c0_10, %c0_11], %16 {strides = array<i32>} : memref<128x128xf32, #tpu.memory_space<vmem>>, vector<128x128xf32>,
    } else {
    }
    return
  }
  func.func @transform_0(%arg0: i32, %arg1: i32, %arg2: memref<4xi32, #tpu.memory_space<smem>>, %arg3: memref<2xi32, #tpu.memory_space<smem>>) -> (i32, i32) {
    %c2_i32 = arith.constant 2 : i32
    %0 = arith.muli %arg0, %c2_i32 : i32
    %1 = arith.addi %0, %arg1 : i32
    %2 = arith.index_cast %1 : i32 to index
    %3 = memref.load %arg2[%2] : memref<4xi32, #tpu.memory_space<smem>>
    %c0_i32 = arith.constant 0 : i32
    return %arg0, %3 : i32, i32
  }
  func.func @transform_1(%arg0: i32, %arg1: i32, %arg2: memref<4xi32, #tpu.memory_space<smem>>, %arg3: memref<2xi32, #tpu.memory_space<smem>>) -> (i32, i32) {
    %c2_i32 = arith.constant 2 : i32
    %0 = arith.muli %arg0, %c2_i32 : i32
    %1 = arith.addi %0, %arg1 : i32
    %2 = arith.index_cast %1 : i32 to index
    %3 = memref.load %arg2[%2] : memref<4xi32, #tpu.memory_space<smem>>
    %c0_i32 = arith.constant 0 : i32
    %c0_i32_0 = arith.constant 0 : i32
    return %3, %c0_i32 : i32, i32
  }
  func.func @transform_2(%arg0: i32, %arg1: i32, %arg2: memref<4xi32, #tpu.memory_space<smem>>, %arg3: memref<2xi32, #tpu.memory_space<smem>>) -> (i32, i32) {
    %c0_i32 = arith.constant 0 : i32
    %c0_i32_0 = arith.constant 0 : i32
    return %arg0, %c0_i32 : i32, i32
  }
  func.func @transform_3(%arg0: i32, %arg1: i32, %arg2: memref<4xi32, #tpu.memory_space<smem>>, %arg3: memref<2xi32, #tpu.memory_space<smem>>) -> (i32, i32) {
    %c0_i32 = arith.constant 0 : i32
    %c0_i32_0 = arith.constant 0 : i32
    return %arg0, %c0_i32 : i32, i32
  }
  func.func @transform_4(%arg0: i32, %arg1: i32, %arg2: memref<4xi32, #tpu.memory_space<smem>>, %arg3: memref<2xi32, #tpu.memory_space<smem>>) -> (i32, i32) {
    %c0_i32 = arith.constant 0 : i32
    %c0_i32_0 = arith.constant 0 : i32
    return %arg0, %c0_i32 : i32, i32
  }
}

</mosaic_0001>

<llo_original>
// kernel: tpu_custom_call.1
$region0: #{tpu_custom_call.1}
  #allocation0 [shape = 'u32[]', space=smem, size = 0x4, offset = 0x4, fixed_abs, tag = 'smem constant byte address 0x4 - core index']
  #allocation1 [shape = 'u32[144,128]{1,0:T(1,128)}', space=vmem, size = 0x12000, scoped, tag = 'internal scratch']
  #allocation2 [shape = 'f32[128,128]{1,0:T(8,128)}', space=vmem, size = 0x10000, scoped, tag = 'scratch operand']
  #allocation3 [shape = 's32[1]{0}', space=sflag, size = 0x4, scoped, tag = 'scoped memory for tpu_custom_call.1']
  #allocation4 [shape = 'u8[512]{0}', space=smem, size = 0x200, scoped, tag = 'prefetched SMEM operand 0']
  #allocation5 [shape = 'u8[512]{0}', space=smem, size = 0x200, scoped, tag = 'prefetched SMEM operand 1']
  %s0 = inlined_call_operand.hbm [shape: s32[4], index: 0, kind: input, shape index: {}]
  %s1 = inlined_call_operand.vmem [shape: s32[2], index: 1, kind: input, shape index: {}]
  %s2 = inlined_call_operand.hbm [shape: bf16[256,256], index: 2, kind: input, shape index: {}]
  %s3 = inlined_call_operand.hbm [shape: bf16[256,128], index: 3, kind: input, shape index: {}]
  %s4 = inlined_call_operand.hbm [shape: f32[256,128], index: 4, kind: input, shape index: {}]
  %s5 = inlined_call_operand.hbm [shape: bf16[256,128], index: 5, kind: output, shape index: {0}]
  %s6 = inlined_call_operand.hbm [shape: f32[256,128], index: 6, kind: output, shape index: {1}]
  %7 = xla_tuple %s5, %s6
  %s8 = sld [smem:[#allocation0]]
  $region77: #{tpu_custom_call.1} parent=0
    _
  %s10 = ssub.s32 1, %s8
  %s11 = scalar_select 0, %s10, %s8
  %13 = dma.hbm_to_smem %s0, 16, [#allocation4], [#allocation3]
  %s14 = sshll.u32 %s1, 4
  %s15 = int_to_ptr.vmem [resolvable:$true] %s14
  %17 = dma.vmem_to_smem %s15, 16, [#allocation5], [#allocation3]
  %18 = dma.done [#allocation3], 32
  %19 = sfence
  $region1: #{tpu_custom_call.1} parent=0
    #allocation6 [shape = 'u8[65536]{0}', space=vmem, size = 0x10000, scoped, tag = 'input window, operand 2']
    #allocation7 [shape = 's32[2]{0}', space=sflag, size = 0x8, scoped, tag = 'scoped memory for tpu_custom_call.1']
    #allocation8 [shape = 's32[2]{0}', space=sflag, size = 0x8, scoped, tag = 'scoped memory for tpu_custom_call.1']
    #allocation9 [shape = 'u8[65536]{0}', space=vmem, size = 0x10000, scoped, tag = 'input window, operand 3']
    #allocation10 [shape = 's32[2]{0}', space=sflag, size = 0x8, scoped, tag = 'scoped memory for tpu_custom_call.1']
    #allocation11 [shape = 'u8[131072]{0}', space=vmem, size = 0x20000, scoped, tag = 'input window, operand 4']
    #allocation12 [shape = 'u8[65536]{0}', space=vmem, size = 0x10000, scoped, tag = 'output window, operand 0']
    #allocation13 [shape = 'u8[131072]{0}', space=vmem, size = 0x20000, scoped, tag = 'output window, operand 1']
    #allocation14 [shape = 's32[2]{0}', space=sflag, size = 0x8, scoped, tag = 'scoped memory for tpu_custom_call.1']
    %20 = vsyncpa [#allocation7], 0
    %s21 = scalar_lea.sflag [#allocation7], 1
    %22 = vsyncpa %s21, 0
    %23 = vsyncpa [#allocation10], 0
    %s24 = scalar_lea.sflag [#allocation10], 1
    %25 = vsyncpa %s24, 0
    %26 = vsyncpa [#allocation8], 0
    %s27 = scalar_lea.sflag [#allocation8], 1
    %28 = vsyncpa %s27, 0
    %29 = vsyncpa [#allocation14], 0
    %s30 = scalar_lea.sflag [#allocation14], 1
    %31 = vsyncpa %s30, 0
    loop: start=0, step=1, limit=6
    $region2: #{tpu_custom_call.1} parent=1 // loop_pre_header
      _
    $region3: #{tpu_custom_call.1} parent=1 // loop_header
      %s33 = sphi 0, %s37
      %p34 = scmp.ge.s32.totalorder %s33, 6
      %s40 = sphi 0, %s52
      %s41 = sphi 0, %s48
      %s42 = sphi 0, %s40
      %s43 = sphi 0, %s41
      %s44 = sphi 0, %s42
      %s45 = sphi 0, %s43
      %s63 = sphi 0, %s65
      %s66 = sphi 0, %s63
      %s67 = sphi 0, %s66
      %s83 = sphi 0, %s67
      %s95 = sphi 0, %s97
      %s98 = sphi 0, %s95
      %s99 = sphi 0, %s98
      %s115 = sphi 0, %s99
      %s121 = sphi 0, %s123
      %s124 = sphi 0, %s121
      %s125 = sphi 0, %s124
      %s141 = sphi 0, %s125
      %s147 = sphi 0, %s149
      %s150 = sphi 0, %s147
      %s151 = sphi 0, %s150
      %s167 = sphi 0, %s151
      %s173 = sphi 0, %s175
      %s176 = sphi 0, %s173
      %s177 = sphi 0, %s176
      %s193 = sphi 0, %s177
    $region4: #{tpu_custom_call.1} parent=1 // loop_header_branch
      %36 = sbr.rel (%p34) target = $region8
    $region5: #{tpu_custom_call.1} parent=1 // loop_body
      %s38 = ssub.s32 %s33, 1
      %s39 = ssub.s32 %s33, 2
      %s46 = sadd.s32 1, %s41
      %p47 = scmp.ge.s32.totalorder %s46, 2
      %s48 = scalar_select %p47, 0, %s46
      %s49 = sadd.s32 1, %s40
      %s50 = scalar_select %p47, %s49, %s40
      %p51 = scmp.ge.s32.totalorder %s50, 2
      %s52 = scalar_select %p51, 0, %s50
      %s53 = smul.u32 %s40, 2
      %s54 = sadd.s32 %s53, %s41
      %s55 = sld [smem:[#allocation4 + %s54]]
      %s56 = smul.u32 %s52, 2
      %s57 = sadd.s32 %s56, %s48
      %s58 = sld [smem:[#allocation4 + %s57]]
      %s59 = ssub.s32 %s40, %s52
      %s60 = ssub.s32 %s55, %s58
      %s61 = sor.u32 %s59, %s60
      %p62 = scmp.eq.s32.totalorder %s61, 0
      %s64 = sadd.s32 %s63, 1
      %s65 = scalar_select %p62, %s63, %s64
      %p68 = pneg %p62
      %p69 = scmp.eq.s32.totalorder %s33, 3
      %p70 = por %p68, %p69
      %p71 = scmp.ne.s32.totalorder %s63, %s66
      %p72 = scmp.eq.s32.totalorder %s33, 0
      %p73 = por %p71, %p72
      %p74 = scmp.ne.s32.totalorder %s63, %s66
      %p75 = scmp.eq.s32.totalorder %s38, 3
      %p76 = por %p74, %p75
      %p77 = scmp.ne.s32.totalorder %s66, %s67
      %p78 = scmp.eq.s32.totalorder %s38, 0
      %p79 = por %p77, %p78
      %p80 = scmp.ne.s32.totalorder %s66, %s67
      %p81 = scmp.eq.s32.totalorder %s39, 3
      %p82 = por %p80, %p81
      %p84 = scmp.ne.s32.totalorder %s67, %s83
      %p85 = scmp.eq.s32.totalorder %s39, 0
      %p86 = por %p84, %p85
      %s87 = smul.u32 %s40, 2
      %s88 = sadd.s32 %s87, %s41
      %s89 = sld [smem:[#allocation4 + %s88]]
      %s90 = smul.u32 %s52, 2
      %s91 = sadd.s32 %s90, %s48
      %s92 = sld [smem:[#allocation4 + %s91]]
      %s93 = ssub.s32 %s89, %s92
      %p94 = scmp.eq.s32.totalorder %s93, 0
      %s96 = sadd.s32 %s95, 1
      %s97 = scalar_select %p94, %s95, %s96
      %p100 = pneg %p94
      %p101 = scmp.eq.s32.totalorder %s33, 3
      %p102 = por %p100, %p101
      %p103 = scmp.ne.s32.totalorder %s95, %s98
      %p104 = scmp.eq.s32.totalorder %s33, 0
      %p105 = por %p103, %p104
      %p106 = scmp.ne.s32.totalorder %s95, %s98
      %p107 = scmp.eq.s32.totalorder %s38, 3
      %p108 = por %p106, %p107
      %p109 = scmp.ne.s32.totalorder %s98, %s99
      %p110 = scmp.eq.s32.totalorder %s38, 0
      %p111 = por %p109, %p110
      %p112 = scmp.ne.s32.totalorder %s98, %s99
      %p113 = scmp.eq.s32.totalorder %s39, 3
      %p114 = por %p112, %p113
      %p116 = scmp.ne.s32.totalorder %s99, %s115
      %p117 = scmp.eq.s32.totalorder %s39, 0
      %p118 = por %p116, %p117
      %s119 = ssub.s32 %s40, %s52
      %p120 = scmp.eq.s32.totalorder %s119, 0
      %s122 = sadd.s32 %s121, 1
      %s123 = scalar_select %p120, %s121, %s122
      %p126 = pneg %p120
      %p127 = scmp.eq.s32.totalorder %s33, 3
      %p128 = por %p126, %p127
      %p129 = scmp.ne.s32.totalorder %s121, %s124
      %p130 = scmp.eq.s32.totalorder %s33, 0
      %p131 = por %p129, %p130
      %p132 = scmp.ne.s32.totalorder %s121, %s124
      %p133 = scmp.eq.s32.totalorder %s38, 3
      %p134 = por %p132, %p133
      %p135 = scmp.ne.s32.totalorder %s124, %s125
      %p136 = scmp.eq.s32.totalorder %s38, 0
      %p137 = por %p135, %p136
      %p138 = scmp.ne.s32.totalorder %s124, %s125
      %p139 = scmp.eq.s32.totalorder %s39, 3
      %p140 = por %p138, %p139
      %p142 = scmp.ne.s32.totalorder %s125, %s141
      %p143 = scmp.eq.s32.totalorder %s39, 0
      %p144 = por %p142, %p143
      %s145 = ssub.s32 %s40, %s52
      %p146 = scmp.eq.s32.totalorder %s145, 0
      %s148 = sadd.s32 %s147, 1
      %s149 = scalar_select %p146, %s147, %s148
      %p152 = pneg %p146
      %p153 = scmp.eq.s32.totalorder %s33, 3
      %p154 = por %p152, %p153
      %p155 = scmp.ne.s32.totalorder %s147, %s150
      %p156 = scmp.eq.s32.totalorder %s33, 0
      %p157 = por %p155, %p156
      %p158 = scmp.ne.s32.totalorder %s147, %s150
      %p159 = scmp.eq.s32.totalorder %s38, 3
      %p160 = por %p158, %p159
      %p161 = scmp.ne.s32.totalorder %s150, %s151
      %p162 = scmp.eq.s32.totalorder %s38, 0
      %p163 = por %p161, %p162
      %p164 = scmp.ne.s32.totalorder %s150, %s151
      %p165 = scmp.eq.s32.totalorder %s39, 3
      %p166 = por %p164, %p165
      %p168 = scmp.ne.s32.totalorder %s151, %s167
      %p169 = scmp.eq.s32.totalorder %s39, 0
      %p170 = por %p168, %p169
      %s171 = ssub.s32 %s40, %s52
      %p172 = scmp.eq.s32.totalorder %s171, 0
      %s174 = sadd.s32 %s173, 1
      %s175 = scalar_select %p172, %s173, %s174
      %p178 = pneg %p172
      %p179 = scmp.eq.s32.totalorder %s33, 3
      %p180 = por %p178, %p179
      %p181 = scmp.ne.s32.totalorder %s173, %s176
      %p182 = scmp.eq.s32.totalorder %s33, 0
      %p183 = por %p181, %p182
      %p184 = scmp.ne.s32.totalorder %s173, %s176
      %p185 = scmp.eq.s32.totalorder %s38, 3
      %p186 = por %p184, %p185
      %p187 = scmp.ne.s32.totalorder %s176, %s177
      %p188 = scmp.eq.s32.totalorder %s38, 0
      %p189 = por %p187, %p188
      %p190 = scmp.ne.s32.totalorder %s176, %s177
      %p191 = scmp.eq.s32.totalorder %s39, 3
      %p192 = por %p190, %p191
      %p194 = scmp.ne.s32.totalorder %s177, %s193
      %p195 = scmp.eq.s32.totalorder %s39, 0
      %p196 = por %p194, %p195
      %p197 = scmp.le.s32.totalorder 1, %s33
      %p198 = scmp.lt.s32.totalorder %s33, 5
      %p199 = pnand %p197, %p198
      %p200 = pneg %p199
      // Predicated region
      $region9: #{tpu_custom_call.1} parent=5 // pred_check
        _
      $region10: #{tpu_custom_call.1} parent=5 // pred_check_branch
        %202 = sbr.rel (%p199) target = $region12
      $region11: #{tpu_custom_call.1} parent=5 // pred_region
        %s203 = ssub.s32 %s33, 1
      $region12: #{tpu_custom_call.1} parent=5 // pred_fallthru
        _
      %p204 = scmp.lt.s32.totalorder %s33, 4
      // Predicated region
      $region13: #{tpu_custom_call.1} parent=5 // pred_check
        %p205 = pneg %p204
      $region14: #{tpu_custom_call.1} parent=5 // pred_check_branch
        %207 = sbr.rel (%p205) target = $region16
      $region15: #{tpu_custom_call.1} parent=5 // pred_region
        // Predicated region
        $region17: #{tpu_custom_call.1} parent=15 // pred_check
          %p208 = pneg %p73
        $region18: #{tpu_custom_call.1} parent=15 // pred_check_branch
          %210 = sbr.rel (%p208) target = $region20
        $region19: #{tpu_custom_call.1} parent=15 // pred_region
          %s211 = sand.u32 %s63, 1
          %s212 = scalar_lea.sflag [#allocation7], %s211
          %s213 = sand.u32 %s63, 1
          %s214 = smul.addr %s213, 64
          %s215 = scalar_lea.vmem [#allocation6], %s214
          %s216 = smul.u32 %s40, 2
          %s217 = sadd.s32 %s216, %s41
          %s218 = sld [smem:[#allocation4 + %s217]]
          %s219 = smul.u32 16, %s40
          %s221 = ssub.s32 1024, 1024
          %222 = vsyncadd %s212, %s221
          %s223 = smul.addr %s219, 2
          %s224 = sadd.s32 %s218, %s223
          %s225 = smul.addr %s224, 64
          %s226 = scalar_lea.hbm %s2, %s225
          %s227 = sshll.u32 %s215, 4
          %s228 = int_to_ptr.vmem [resolvable:$true] %s227
          %233 = dma.hbm_to_vmem [thread:$0]  %s226, 1024, %s228, %s212, 128, 64, 4
        $region20: #{tpu_custom_call.1} parent=15 // pred_fallthru
          _
        // Predicated region
        $region21: #{tpu_custom_call.1} parent=15 // pred_check
          %p234 = pneg %p105
        $region22: #{tpu_custom_call.1} parent=15 // pred_check_branch
          %236 = sbr.rel (%p234) target = $region24
        $region23: #{tpu_custom_call.1} parent=15 // pred_region
          %s237 = sand.u32 %s33, 1
          %s238 = scalar_lea.sflag [#allocation10], %s237
          %s239 = sand.u32 %s95, 1
          %s240 = smul.addr %s239, 64
          %s241 = scalar_lea.vmem [#allocation9], %s240
          %s242 = smul.u32 %s40, 2
          %s243 = sadd.s32 %s242, %s41
          %s244 = sld [smem:[#allocation4 + %s243]]
          %s245 = smul.u32 16, %s244
          %s247 = ssub.s32 1024, 1024
          %248 = vsyncadd %s238, %s247
          %s249 = smul.addr %s245, 64
          %s250 = scalar_lea.hbm %s3, %s249
          %s251 = sshll.u32 %s241, 4
          %s252 = int_to_ptr.vmem [resolvable:$true] %s251
          %257 = dma.hbm_to_vmem [thread:$0]  %s250, 1024, %s252, %s238, 64, 64, 4
        $region24: #{tpu_custom_call.1} parent=15 // pred_fallthru
          _
        // Predicated region
        $region25: #{tpu_custom_call.1} parent=15 // pred_check
          %p258 = pneg %p131
        $region26: #{tpu_custom_call.1} parent=15 // pred_check_branch
          %260 = sbr.rel (%p258) target = $region28
        $region27: #{tpu_custom_call.1} parent=15 // pred_region
          %s261 = sand.u32 %s33, 1
          %s262 = scalar_lea.sflag [#allocation10], %s261
          %s263 = sand.u32 %s121, 1
          %s264 = smul.addr %s263, 128
          %s265 = scalar_lea.vmem [#allocation11], %s264
          %s266 = smul.u32 16, %s40
          %s268 = ssub.s32 2048, 2048
          %269 = vsyncadd %s262, %s268
          %s270 = smul.addr %s266, 128
          %s271 = scalar_lea.hbm %s4, %s270
          %s272 = sshll.u32 %s265, 4
          %s273 = int_to_ptr.vmem [resolvable:$true] %s272
          %278 = dma.hbm_to_vmem [thread:$0]  %s271, 2048, %s273, %s262, 128, 128, 8
        $region28: #{tpu_custom_call.1} parent=15 // pred_fallthru
          _
      $region16: #{tpu_custom_call.1} parent=5 // pred_fallthru
        _
      %p279 = scmp.le.s32.totalorder 1, %s33
      %p280 = scmp.lt.s32.totalorder %s33, 5
      %p281 = pnand %p279, %p280
      %p282 = pneg %p281
      // Predicated region
      $region29: #{tpu_custom_call.1} parent=5 // pred_check
        _
      $region30: #{tpu_custom_call.1} parent=5 // pred_check_branch
        %284 = sbr.rel (%p281) target = $region32
      $region31: #{tpu_custom_call.1} parent=5 // pred_region
        %s285 = ssub.s32 %s33, 1
        %s286 = sand.u32 %s66, 1
        %s287 = scalar_lea.sflag [#allocation7], %s286
        %s288 = sand.u32 %s66, 1
        %s289 = smul.addr %s288, 64
        %s290 = scalar_lea.vmem [#allocation6], %s289
        // Predicated region
        $region33: #{tpu_custom_call.1} parent=31 // pred_check
          %p291 = pneg %p79
        $region34: #{tpu_custom_call.1} parent=31 // pred_check_branch
          %293 = sbr.rel (%p291) target = $region36
        $region35: #{tpu_custom_call.1} parent=31 // pred_region
          %294 = dma.done %s287, 1024
        $region36: #{tpu_custom_call.1} parent=31 // pred_fallthru
          _
        %s295 = sand.u32 %s38, 1
        %s296 = scalar_lea.sflag [#allocation10], %s295
        %s297 = sand.u32 %s98, 1
        %s298 = smul.addr %s297, 64
        %s299 = scalar_lea.vmem [#allocation9], %s298
        // Predicated region
        $region37: #{tpu_custom_call.1} parent=31 // pred_check
          %p300 = pneg %p111
        $region38: #{tpu_custom_call.1} parent=31 // pred_check_branch
          %302 = sbr.rel (%p300) target = $region40
        $region39: #{tpu_custom_call.1} parent=31 // pred_region
          %303 = dma.done %s296, 1024
        $region40: #{tpu_custom_call.1} parent=31 // pred_fallthru
          _
        %s304 = sand.u32 %s38, 1
        %s305 = scalar_lea.sflag [#allocation10], %s304
        %s306 = sand.u32 %s124, 1
        %s307 = smul.addr %s306, 128
        %s308 = scalar_lea.vmem [#allocation11], %s307
        // Predicated region
        $region41: #{tpu_custom_call.1} parent=31 // pred_check
          %p309 = pneg %p137
        $region42: #{tpu_custom_call.1} parent=31 // pred_check_branch
          %311 = sbr.rel (%p309) target = $region44
        $region43: #{tpu_custom_call.1} parent=31 // pred_region
          %312 = dma.done %s305, 2048
        $region44: #{tpu_custom_call.1} parent=31 // pred_fallthru
          _
        %s313 = sand.u32 %s66, 1
        %s314 = scalar_lea.sflag [#allocation7], %s313
        %s315 = sand.u32 %s66, 1
        %s316 = smul.addr %s315, 64
        %s317 = scalar_lea.vmem [#allocation6], %s316
        %p318 = pneg %p79
        %p319 = pneg %p76
        %s320 = sand.u32 %s38, 1
        %s321 = scalar_lea.sflag [#allocation10], %s320
        %s322 = sand.u32 %s98, 1
        %s323 = smul.addr %s322, 64
        %s324 = scalar_lea.vmem [#allocation9], %s323
        %p325 = pneg %p111
        %p326 = pneg %p108
        %s327 = sand.u32 %s38, 1
        %s328 = scalar_lea.sflag [#allocation10], %s327
        %s329 = sand.u32 %s124, 1
        %s330 = smul.addr %s329, 128
        %s331 = scalar_lea.vmem [#allocation11], %s330
        %p332 = pneg %p137
        %p333 = pneg %p134
        %p334 = pneg %p163
        %p335 = pneg %p160
        %s336 = sand.u32 %s150, 1
        %s337 = scalar_lea.sflag [#allocation8], %s336
        %s338 = sand.u32 %s150, 1
        %s339 = smul.addr %s338, 64
        %s340 = scalar_lea.vmem [#allocation12], %s339
        %p341 = pneg %p189
        %p342 = pneg %p186
        %s343 = sand.u32 %s176, 1
        %s344 = scalar_lea.sflag [#allocation14], %s343
        %s345 = sand.u32 %s176, 1
        %s346 = smul.addr %s345, 128
        %s347 = scalar_lea.vmem [#allocation13], %s346
        %s348 = smul.u32 %s42, 2
        %s349 = sadd.s32 %s348, %s43
        %s350 = sld [smem:[#allocation4 + %s349]]
        %s351 = smul.u32 16, %s42
        %s352 = smul.u32 %s42, 2
        %s353 = sadd.s32 %s352, %s43
        %s354 = sld [smem:[#allocation4 + %s353]]
        %s355 = smul.u32 16, %s354
        %s356 = smul.u32 16, %s42
        %s357 = smul.u32 16, %s42
        %s358 = smul.u32 16, %s42
        %p360 = scmp.eq.s32.totalorder %s43, 0
        // Predicated region
        $region45: #{tpu_custom_call.1} parent=31 // pred_check
          %p361 = pneg %p360
        $region46: #{tpu_custom_call.1} parent=31 // pred_check_branch
          %363 = sbr.rel (%p361) target = $region48
        $region47: #{tpu_custom_call.1} parent=31 // pred_region
          %364 = vst [vmem:[#allocation2] sm:$0xff] 0.0
          %365 = vst [vmem:[#allocation2 + $0x8] sm:$0xff] 0.0
          %366 = vst [vmem:[#allocation2 + $0x10] sm:$0xff] 0.0
          %367 = vst [vmem:[#allocation2 + $0x18] sm:$0xff] 0.0
          %368 = vst [vmem:[#allocation2 + $0x20] sm:$0xff] 0.0
          %369 = vst [vmem:[#allocation2 + $0x28] sm:$0xff] 0.0
          %370 = vst [vmem:[#allocation2 + $0x30] sm:$0xff] 0.0
          %371 = vst [vmem:[#allocation2 + $0x38] sm:$0xff] 0.0
          %372 = vst [vmem:[#allocation2 + $0x40] sm:$0xff] 0.0
          %373 = vst [vmem:[#allocation2 + $0x48] sm:$0xff] 0.0
          %374 = vst [vmem:[#allocation2 + $0x50] sm:$0xff] 0.0
          %375 = vst [vmem:[#allocation2 + $0x58] sm:$0xff] 0.0
          %376 = vst [vmem:[#allocation2 + $0x60] sm:$0xff] 0.0
          %377 = vst [vmem:[#allocation2 + $0x68] sm:$0xff] 0.0
          %378 = vst [vmem:[#allocation2 + $0x70] sm:$0xff] 0.0
          %379 = vst [vmem:[#allocation2 + $0x78] sm:$0xff] 0.0
        $region48: #{tpu_custom_call.1} parent=31 // pred_fallthru
          _
        %s380 = sld [smem:[#allocation5 + %s42]]
        %p381 = scmp.lt.s32.totalorder %s43, %s380
        // Predicated region
        $region49: #{tpu_custom_call.1} parent=31 // pred_check
          %p382 = pneg %p381
        $region50: #{tpu_custom_call.1} parent=31 // pred_check_branch
          %384 = sbr.rel (%p382) target = $region52
        $region51: #{tpu_custom_call.1} parent=31 // pred_region
          %v385 = vld [vmem:[#allocation2] sm:$0xff]
          %v386 = vld [vmem:[#allocation2 + $0x8] sm:$0xff]
          %v387 = vld [vmem:[#allocation2 + $0x10] sm:$0xff]
          %v388 = vld [vmem:[#allocation2 + $0x18] sm:$0xff]
          %v389 = vld [vmem:[#allocation2 + $0x20] sm:$0xff]
          %v390 = vld [vmem:[#allocation2 + $0x28] sm:$0xff]
          %v391 = vld [vmem:[#allocation2 + $0x30] sm:$0xff]
          %v392 = vld [vmem:[#allocation2 + $0x38] sm:$0xff]
          %v393 = vld [vmem:[#allocation2 + $0x40] sm:$0xff]
          %v394 = vld [vmem:[#allocation2 + $0x48] sm:$0xff]
          %v395 = vld [vmem:[#allocation2 + $0x50] sm:$0xff]
          %v396 = vld [vmem:[#allocation2 + $0x58] sm:$0xff]
          %v397 = vld [vmem:[#allocation2 + $0x60] sm:$0xff]
          %v398 = vld [vmem:[#allocation2 + $0x68] sm:$0xff]
          %v399 = vld [vmem:[#allocation2 + $0x70] sm:$0xff]
          %v400 = vld [vmem:[#allocation2 + $0x78] sm:$0xff]
          %v401 = vld [vmem:[%s290] sm:$0xf]
          %v402 = vld [vmem:[%s290 + $0x4] sm:$0xf]
          %v403 = vld [vmem:[%s290 + $0x8] sm:$0xf]
          %v404 = vld [vmem:[%s290 + $0xc] sm:$0xf]
          %v405 = vld [vmem:[%s290 + $0x10] sm:$0xf]
          %v406 = vld [vmem:[%s290 + $0x14] sm:$0xf]
          %v407 = vld [vmem:[%s290 + $0x18] sm:$0xf]
          %v408 = vld [vmem:[%s290 + $0x1c] sm:$0xf]
          %v409 = vld [vmem:[%s290 + $0x20] sm:$0xf]
          %v410 = vld [vmem:[%s290 + $0x24] sm:$0xf]
          %v411 = vld [vmem:[%s290 + $0x28] sm:$0xf]
          %v412 = vld [vmem:[%s290 + $0x2c] sm:$0xf]
          %v413 = vld [vmem:[%s290 + $0x30] sm:$0xf]
          %v414 = vld [vmem:[%s290 + $0x34] sm:$0xf]
          %v415 = vld [vmem:[%s290 + $0x38] sm:$0xf]
          %v416 = vld [vmem:[%s290 + $0x3c] sm:$0xf]
          %v417 = vld [vmem:[%s299] sm:$0xf]
          %v418 = vld [vmem:[%s299 + $0x4] sm:$0xf]
          %v419 = vld [vmem:[%s299 + $0x8] sm:$0xf]
          %v420 = vld [vmem:[%s299 + $0xc] sm:$0xf]
          %v421 = vld [vmem:[%s299 + $0x10] sm:$0xf]
          %v422 = vld [vmem:[%s299 + $0x14] sm:$0xf]
          %v423 = vld [vmem:[%s299 + $0x18] sm:$0xf]
          %v424 = vld [vmem:[%s299 + $0x1c] sm:$0xf]
          %v425 = vld [vmem:[%s299 + $0x20] sm:$0xf]
          %v426 = vld [vmem:[%s299 + $0x24] sm:$0xf]
          %v427 = vld [vmem:[%s299 + $0x28] sm:$0xf]
          %v428 = vld [vmem:[%s299 + $0x2c] sm:$0xf]
          %v429 = vld [vmem:[%s299 + $0x30] sm:$0xf]
          %v430 = vld [vmem:[%s299 + $0x34] sm:$0xf]
          %v431 = vld [vmem:[%s299 + $0x38] sm:$0xf]
          %v432 = vld [vmem:[%s299 + $0x3c] sm:$0xf]
          %v449 = vunpack.c.l.b16 %v401
          %v450 = vunpack.c.l.b16 %v402
          %v451 = vunpack.c.l.b16 %v403
          %v452 = vunpack.c.l.b16 %v404
          %v453 = vunpack.c.l.b16 %v405
          %v454 = vunpack.c.l.b16 %v406
          %v455 = vunpack.c.l.b16 %v407
          %v456 = vunpack.c.l.b16 %v408
          %v457 = vunpack.c.l.b16 %v409
          %v458 = vunpack.c.l.b16 %v410
          %v459 = vunpack.c.l.b16 %v411
          %v460 = vunpack.c.l.b16 %v412
          %v461 = vunpack.c.l.b16 %v413
          %v462 = vunpack.c.l.b16 %v414
          %v463 = vunpack.c.l.b16 %v415
          %v464 = vunpack.c.l.b16 %v416
          %v465 = vpack.c.b16 %v450, %v449
          %v466 = vpack.c.b16 %v452, %v451
          %v467 = vpack.c.b16 %v454, %v453
          %v468 = vpack.c.b16 %v456, %v455
          %v469 = vpack.c.b16 %v458, %v457
          %v470 = vpack.c.b16 %v460, %v459
          %v471 = vpack.c.b16 %v462, %v461
          %v472 = vpack.c.b16 %v464, %v463
          %v497 = vunpack.c.l.b16 %v417
          %v498 = vunpack.c.l.b16 %v418
          %v499 = vunpack.c.l.b16 %v419
          %v500 = vunpack.c.l.b16 %v420
          %v501 = vunpack.c.l.b16 %v421
          %v502 = vunpack.c.l.b16 %v422
          %v503 = vunpack.c.l.b16 %v423
          %v504 = vunpack.c.l.b16 %v424
          %v505 = vunpack.c.l.b16 %v425
          %v506 = vunpack.c.l.b16 %v426
          %v507 = vunpack.c.l.b16 %v427
          %v508 = vunpack.c.l.b16 %v428
          %v509 = vunpack.c.l.b16 %v429
          %v510 = vunpack.c.l.b16 %v430
          %v511 = vunpack.c.l.b16 %v431
          %v512 = vunpack.c.l.b16 %v432
          %v513 = vpack.c.b16 %v498, %v497
          %v514 = vpack.c.b16 %v500, %v499
          %v515 = vpack.c.b16 %v502, %v501
          %v516 = vpack.c.b16 %v504, %v503
          %v517 = vpack.c.b16 %v506, %v505
          %v518 = vpack.c.b16 %v508, %v507
          %v519 = vpack.c.b16 %v510, %v509
          %v520 = vpack.c.b16 %v512, %v511
          %529 = vmatprep.subr.bf16.mxu0 0
          %530 = vmatpush1.bf16.msra.mxu0 %v513
          %531 = vmatprep.subr.bf16.mxu0 0
          %532 = vmatpush1.bf16.msra.mxu0 %v514
          %533 = vmatprep.subr.bf16.mxu0 0
          %534 = vmatpush1.bf16.msra.mxu0 %v515
          %535 = vmatprep.subr.bf16.mxu0 0
          %536 = vmatpush1.bf16.msra.mxu0 %v516
          %537 = vmatprep.subr.bf16.mxu0 0
          %538 = vmatpush1.bf16.msra.mxu0 %v517
          %539 = vmatprep.subr.bf16.mxu0 0
          %540 = vmatpush1.bf16.msra.mxu0 %v518
          %541 = vmatprep.subr.bf16.mxu0 0
          %542 = vmatpush1.bf16.msra.mxu0 %v519
          %543 = vmatprep.subr.bf16.mxu0 0
          %544 = vmatpush1.bf16.msra.mxu0 %v520
          %545 = vmatprep.subr.bf16.mxu0 0
          %546 = vmatpush1.bf16.msra.mxu0 0
          %547 = vmatprep.subr.bf16.mxu0 0
          %548 = vmatpush1.bf16.msra.mxu0 0
          %549 = vmatprep.subr.bf16.mxu0 0
          %550 = vmatpush1.bf16.msra.mxu0 0
          %551 = vmatprep.subr.bf16.mxu0 0
          %552 = vmatpush1.bf16.msra.mxu0 0
          %553 = vmatprep.subr.bf16.mxu0 0
          %554 = vmatpush1.bf16.msra.mxu0 0
          %555 = vmatprep.subr.bf16.mxu0 0
          %556 = vmatpush1.bf16.msra.mxu0 0
          %557 = vmatprep.subr.bf16.mxu0 0
          %558 = vmatpush1.bf16.msra.mxu0 0
          %559 = vmatprep.subr.bf16.mxu0 0
          %560 = vmatpush1.bf16.msra.mxu0 0
          %561 = vmatprep.mubr.bf16.mxu0 0
          %562 = vmatmul.mubr.bf16.gmra.mrb[0].mxu0 %v465
          %v563 = vpop.f32.mrb[0].mxu0
          %v564 = vadd.f32 0.0, %v563
          %v565 = vpop.f32.mrb[0].mxu0
          %v566 = vpop.f32.mrb[0].mxu0
          %v567 = vadd.f32 0.0, %v566
          %v568 = vpop.f32.mrb[0].mxu0
          %569 = vmatprep.mubr.bf16.mxu0 0
          %570 = vmatmul.mubr.bf16.gmra.mrb[0].mxu0 %v466
          %v571 = vpop.f32.mrb[0].mxu0
          %v572 = vadd.f32 0.0, %v571
          %v573 = vpop.f32.mrb[0].mxu0
          %v574 = vpop.f32.mrb[0].mxu0
          %v575 = vadd.f32 0.0, %v574
          %v576 = vpop.f32.mrb[0].mxu0
          %577 = vmatprep.mubr.bf16.mxu0 0
          %578 = vmatmul.mubr.bf16.gmra.mrb[0].mxu0 %v467
          %v579 = vpop.f32.mrb[0].mxu0
          %v580 = vadd.f32 0.0, %v579
          %v581 = vpop.f32.mrb[0].mxu0
          %v582 = vpop.f32.mrb[0].mxu0
          %v583 = vadd.f32 0.0, %v582
          %v584 = vpop.f32.mrb[0].mxu0
          %585 = vmatprep.mubr.bf16.mxu0 0
          %586 = vmatmul.mubr.bf16.gmra.mrb[0].mxu0 %v468
          %v587 = vpop.f32.mrb[0].mxu0
          %v588 = vadd.f32 0.0, %v587
          %v589 = vpop.f32.mrb[0].mxu0
          %v590 = vpop.f32.mrb[0].mxu0
          %v591 = vadd.f32 0.0, %v590
          %v592 = vpop.f32.mrb[0].mxu0
          %593 = vmatprep.mubr.bf16.mxu0 0
          %594 = vmatmul.mubr.bf16.gmra.mrb[0].mxu0 %v469
          %v595 = vpop.f32.mrb[0].mxu0
          %v596 = vadd.f32 0.0, %v595
          %v597 = vpop.f32.mrb[0].mxu0
          %v598 = vpop.f32.mrb[0].mxu0
          %v599 = vadd.f32 0.0, %v598
          %v600 = vpop.f32.mrb[0].mxu0
          %601 = vmatprep.mubr.bf16.mxu0 0
          %602 = vmatmul.mubr.bf16.gmra.mrb[0].mxu0 %v470
          %v603 = vpop.f32.mrb[0].mxu0
          %v604 = vadd.f32 0.0, %v603
          %v605 = vpop.f32.mrb[0].mxu0
          %v606 = vpop.f32.mrb[0].mxu0
          %v607 = vadd.f32 0.0, %v606
          %v608 = vpop.f32.mrb[0].mxu0
          %609 = vmatprep.mubr.bf16.mxu0 0
          %610 = vmatmul.mubr.bf16.gmra.mrb[0].mxu0 %v471
          %v611 = vpop.f32.mrb[0].mxu0
          %v612 = vadd.f32 0.0, %v611
          %v613 = vpop.f32.mrb[0].mxu0
          %v614 = vpop.f32.mrb[0].mxu0
          %v615 = vadd.f32 0.0, %v614
          %v616 = vpop.f32.mrb[0].mxu0
          %617 = vmatprep.mubr.bf16.mxu0 0
          %618 = vmatmul.mubr.bf16.gmra.mrb[0].mxu0 %v472
          %v619 = vpop.f32.mrb[0].mxu0
          %v620 = vadd.f32 0.0, %v619
          %v621 = vpop.f32.mrb[0].mxu0
          %v622 = vpop.f32.mrb[0].mxu0
          %v623 = vadd.f32 0.0, %v622
          %v624 = vpop.f32.mrb[0].mxu0
          %625 = vdwg.mxu0
          %v626 = vadd.f32 %v385, %v564
          %v627 = vadd.f32 %v386, %v567
          %v628 = vadd.f32 %v387, %v572
          %v629 = vadd.f32 %v388, %v575
          %v630 = vadd.f32 %v389, %v580
          %v631 = vadd.f32 %v390, %v583
          %v632 = vadd.f32 %v391, %v588
          %v633 = vadd.f32 %v392, %v591
          %v634 = vadd.f32 %v393, %v596
          %v635 = vadd.f32 %v394, %v599
          %v636 = vadd.f32 %v395, %v604
          %v637 = vadd.f32 %v396, %v607
          %v638 = vadd.f32 %v397, %v612
          %v639 = vadd.f32 %v398, %v615
          %v640 = vadd.f32 %v399, %v620
          %v641 = vadd.f32 %v400, %v623
          %642 = vst [vmem:[#allocation2] sm:$0xff] %v626
          %643 = vst [vmem:[#allocation2 + $0x8] sm:$0xff] %v627
          %644 = vst [vmem:[#allocation2 + $0x10] sm:$0xff] %v628
          %645 = vst [vmem:[#allocation2 + $0x18] sm:$0xff] %v629
          %646 = vst [vmem:[#allocation2 + $0x20] sm:$0xff] %v630
          %647 = vst [vmem:[#allocation2 + $0x28] sm:$0xff] %v631
          %648 = vst [vmem:[#allocation2 + $0x30] sm:$0xff] %v632
          %649 = vst [vmem:[#allocation2 + $0x38] sm:$0xff] %v633
          %650 = vst [vmem:[#allocation2 + $0x40] sm:$0xff] %v634
          %651 = vst [vmem:[#allocation2 + $0x48] sm:$0xff] %v635
          %652 = vst [vmem:[#allocation2 + $0x50] sm:$0xff] %v636
          %653 = vst [vmem:[#allocation2 + $0x58] sm:$0xff] %v637
          %654 = vst [vmem:[#allocation2 + $0x60] sm:$0xff] %v638
          %655 = vst [vmem:[#allocation2 + $0x68] sm:$0xff] %v639
          %656 = vst [vmem:[#allocation2 + $0x70] sm:$0xff] %v640
          %657 = vst [vmem:[#allocation2 + $0x78] sm:$0xff] %v641
        $region52: #{tpu_custom_call.1} parent=31 // pred_fallthru
          _
        %p658 = scmp.eq.s32.totalorder %s43, 1
        // Predicated region
        $region53: #{tpu_custom_call.1} parent=31 // pred_check
          %p659 = pneg %p658
        $region54: #{tpu_custom_call.1} parent=31 // pred_check_branch
          %661 = sbr.rel (%p659) target = $region56
        $region55: #{tpu_custom_call.1} parent=31 // pred_region
          %v662 = vld [vmem:[#allocation2] sm:$0xff]
          %v663 = vld [vmem:[#allocation2 + $0x8] sm:$0xff]
          %v664 = vld [vmem:[#allocation2 + $0x10] sm:$0xff]
          %v665 = vld [vmem:[#allocation2 + $0x18] sm:$0xff]
          %v666 = vld [vmem:[#allocation2 + $0x20] sm:$0xff]
          %v667 = vld [vmem:[#allocation2 + $0x28] sm:$0xff]
          %v668 = vld [vmem:[#allocation2 + $0x30] sm:$0xff]
          %v669 = vld [vmem:[#allocation2 + $0x38] sm:$0xff]
          %v670 = vld [vmem:[#allocation2 + $0x40] sm:$0xff]
          %v671 = vld [vmem:[#allocation2 + $0x48] sm:$0xff]
          %v672 = vld [vmem:[#allocation2 + $0x50] sm:$0xff]
          %v673 = vld [vmem:[#allocation2 + $0x58] sm:$0xff]
          %v674 = vld [vmem:[#allocation2 + $0x60] sm:$0xff]
          %v675 = vld [vmem:[#allocation2 + $0x68] sm:$0xff]
          %v676 = vld [vmem:[#allocation2 + $0x70] sm:$0xff]
          %v677 = vld [vmem:[#allocation2 + $0x78] sm:$0xff]
          %v678 = vpack.c.bf16 %v663, %v662
          %v679 = vpack.c.bf16 %v665, %v664
          %v680 = vpack.c.bf16 %v667, %v666
          %v681 = vpack.c.bf16 %v669, %v668
          %v682 = vpack.c.bf16 %v671, %v670
          %v683 = vpack.c.bf16 %v673, %v672
          %v684 = vpack.c.bf16 %v675, %v674
          %v685 = vpack.c.bf16 %v677, %v676
          %v694 = vunpack.c.l.b16 %v678
          %v695 = vunpack.c.h.b16 %v678
          %v696 = vunpack.c.l.b16 %v679
          %v697 = vunpack.c.h.b16 %v679
          %v698 = vunpack.c.l.b16 %v680
          %v699 = vunpack.c.h.b16 %v680
          %v700 = vunpack.c.l.b16 %v681
          %v701 = vunpack.c.h.b16 %v681
          %v702 = vunpack.c.l.b16 %v682
          %v703 = vunpack.c.h.b16 %v682
          %v704 = vunpack.c.l.b16 %v683
          %v705 = vunpack.c.h.b16 %v683
          %v706 = vunpack.c.l.b16 %v684
          %v707 = vunpack.c.h.b16 %v684
          %v708 = vunpack.c.l.b16 %v685
          %v709 = vunpack.c.h.b16 %v685
          %v710 = vpack.c.b16 %v694, %v694
          %v711 = vpack.c.b16 %v695, %v695
          %v712 = vpack.c.b16 %v696, %v696
          %v713 = vpack.c.b16 %v697, %v697
          %v714 = vpack.c.b16 %v698, %v698
          %v715 = vpack.c.b16 %v699, %v699
          %v716 = vpack.c.b16 %v700, %v700
          %v717 = vpack.c.b16 %v701, %v701
          %v718 = vpack.c.b16 %v702, %v702
          %v719 = vpack.c.b16 %v703, %v703
          %v720 = vpack.c.b16 %v704, %v704
          %v721 = vpack.c.b16 %v705, %v705
          %v722 = vpack.c.b16 %v706, %v706
          %v723 = vpack.c.b16 %v707, %v707
          %v724 = vpack.c.b16 %v708, %v708
          %v725 = vpack.c.b16 %v709, %v709
          %742 = vst [vmem:[%s340] sm:$0xf] %v710
          %743 = vst [vmem:[%s340 + $0x4] sm:$0xf] %v711
          %744 = vst [vmem:[%s340 + $0x8] sm:$0xf] %v712
          %745 = vst [vmem:[%s340 + $0xc] sm:$0xf] %v713
          %746 = vst [vmem:[%s340 + $0x10] sm:$0xf] %v714
          %747 = vst [vmem:[%s340 + $0x14] sm:$0xf] %v715
          %748 = vst [vmem:[%s340 + $0x18] sm:$0xf] %v716
          %749 = vst [vmem:[%s340 + $0x1c] sm:$0xf] %v717
          %750 = vst [vmem:[%s340 + $0x20] sm:$0xf] %v718
          %751 = vst [vmem:[%s340 + $0x24] sm:$0xf] %v719
          %752 = vst [vmem:[%s340 + $0x28] sm:$0xf] %v720
          %753 = vst [vmem:[%s340 + $0x2c] sm:$0xf] %v721
          %754 = vst [vmem:[%s340 + $0x30] sm:$0xf] %v722
          %755 = vst [vmem:[%s340 + $0x34] sm:$0xf] %v723
          %756 = vst [vmem:[%s340 + $0x38] sm:$0xf] %v724
          %757 = vst [vmem:[%s340 + $0x3c] sm:$0xf] %v725
          %v758 = vld [vmem:[%s308] sm:$0xff]
          %v759 = vld [vmem:[%s308 + $0x8] sm:$0xff]
          %v760 = vld [vmem:[%s308 + $0x10] sm:$0xff]
          %v761 = vld [vmem:[%s308 + $0x18] sm:$0xff]
          %v762 = vld [vmem:[%s308 + $0x20] sm:$0xff]
          %v763 = vld [vmem:[%s308 + $0x28] sm:$0xff]
          %v764 = vld [vmem:[%s308 + $0x30] sm:$0xff]
          %v765 = vld [vmem:[%s308 + $0x38] sm:$0xff]
          %v766 = vld [vmem:[%s308 + $0x40] sm:$0xff]
          %v767 = vld [vmem:[%s308 + $0x48] sm:$0xff]
          %v768 = vld [vmem:[%s308 + $0x50] sm:$0xff]
          %v769 = vld [vmem:[%s308 + $0x58] sm:$0xff]
          %v770 = vld [vmem:[%s308 + $0x60] sm:$0xff]
          %v771 = vld [vmem:[%s308 + $0x68] sm:$0xff]
          %v772 = vld [vmem:[%s308 + $0x70] sm:$0xff]
          %v773 = vld [vmem:[%s308 + $0x78] sm:$0xff]
          %v774 = vld [vmem:[#allocation2] sm:$0xff]
          %v775 = vld [vmem:[#allocation2 + $0x8] sm:$0xff]
          %v776 = vld [vmem:[#allocation2 + $0x10] sm:$0xff]
          %v777 = vld [vmem:[#allocation2 + $0x18] sm:$0xff]
          %v778 = vld [vmem:[#allocation2 + $0x20] sm:$0xff]
          %v779 = vld [vmem:[#allocation2 + $0x28] sm:$0xff]
          %v780 = vld [vmem:[#allocation2 + $0x30] sm:$0xff]
          %v781 = vld [vmem:[#allocation2 + $0x38] sm:$0xff]
          %v782 = vld [vmem:[#allocation2 + $0x40] sm:$0xff]
          %v783 = vld [vmem:[#allocation2 + $0x48] sm:$0xff]
          %v784 = vld [vmem:[#allocation2 + $0x50] sm:$0xff]
          %v785 = vld [vmem:[#allocation2 + $0x58] sm:$0xff]
          %v786 = vld [vmem:[#allocation2 + $0x60] sm:$0xff]
          %v787 = vld [vmem:[#allocation2 + $0x68] sm:$0xff]
          %v788 = vld [vmem:[#allocation2 + $0x70] sm:$0xff]
          %v789 = vld [vmem:[#allocation2 + $0x78] sm:$0xff]
          %v790 = vadd.f32 %v758, %v774
          %v791 = vadd.f32 %v759, %v775
          %v792 = vadd.f32 %v760, %v776
          %v793 = vadd.f32 %v761, %v777
          %v794 = vadd.f32 %v762, %v778
          %v795 = vadd.f32 %v763, %v779
          %v796 = vadd.f32 %v764, %v780
          %v797 = vadd.f32 %v765, %v781
          %v798 = vadd.f32 %v766, %v782
          %v799 = vadd.f32 %v767, %v783
          %v800 = vadd.f32 %v768, %v784
          %v801 = vadd.f32 %v769, %v785
          %v802 = vadd.f32 %v770, %v786
          %v803 = vadd.f32 %v771, %v787
          %v804 = vadd.f32 %v772, %v788
          %v805 = vadd.f32 %v773, %v789
          %806 = vst [vmem:[%s347] sm:$0xff] %v790
          %807 = vst [vmem:[%s347 + $0x8] sm:$0xff] %v791
          %808 = vst [vmem:[%s347 + $0x10] sm:$0xff] %v792
          %809 = vst [vmem:[%s347 + $0x18] sm:$0xff] %v793
          %810 = vst [vmem:[%s347 + $0x20] sm:$0xff] %v794
          %811 = vst [vmem:[%s347 + $0x28] sm:$0xff] %v795
          %812 = vst [vmem:[%s347 + $0x30] sm:$0xff] %v796
          %813 = vst [vmem:[%s347 + $0x38] sm:$0xff] %v797
          %814 = vst [vmem:[%s347 + $0x40] sm:$0xff] %v798
          %815 = vst [vmem:[%s347 + $0x48] sm:$0xff] %v799
          %816 = vst [vmem:[%s347 + $0x50] sm:$0xff] %v800
          %817 = vst [vmem:[%s347 + $0x58] sm:$0xff] %v801
          %818 = vst [vmem:[%s347 + $0x60] sm:$0xff] %v802
          %819 = vst [vmem:[%s347 + $0x68] sm:$0xff] %v803
          %820 = vst [vmem:[%s347 + $0x70] sm:$0xff] %v804
          %821 = vst [vmem:[%s347 + $0x78] sm:$0xff] %v805
        $region56: #{tpu_custom_call.1} parent=31 // pred_fallthru
          _
        %s822 = sand.u32 %s150, 1
        %s823 = scalar_lea.sflag [#allocation8], %s822
        %s824 = sand.u32 %s150, 1
        %s825 = smul.addr %s824, 64
        %s826 = scalar_lea.vmem [#allocation12], %s825
        %s827 = sand.u32 %s176, 1
        %s828 = scalar_lea.sflag [#allocation14], %s827
        %s829 = sand.u32 %s176, 1
        %s830 = smul.addr %s829, 128
        %s831 = scalar_lea.vmem [#allocation13], %s830
        // Predicated region
        $region57: #{tpu_custom_call.1} parent=31 // pred_check
          %p832 = pneg %p160
        $region58: #{tpu_custom_call.1} parent=31 // pred_check_branch
          %834 = sbr.rel (%p832) target = $region60
        $region59: #{tpu_custom_call.1} parent=31 // pred_region
          %s835 = smul.u32 16, %s42
          %s837 = ssub.s32 1024, 1024
          %838 = vsyncadd %s823, %s837
          %s839 = smul.addr %s835, 64
          %s840 = scalar_lea.hbm %s5, %s839
          %s841 = sshll.u32 %s826, 4
          %s842 = int_to_ptr.vmem [resolvable:$true] %s841
          %847 = dma.vmem_to_hbm [thread:$0]  %s842, 1024, %s840, %s823, 64, 64, 4
        $region60: #{tpu_custom_call.1} parent=31 // pred_fallthru
          _
        // Predicated region
        $region61: #{tpu_custom_call.1} parent=31 // pred_check
          %p848 = pneg %p186
        $region62: #{tpu_custom_call.1} parent=31 // pred_check_branch
          %850 = sbr.rel (%p848) target = $region64
        $region63: #{tpu_custom_call.1} parent=31 // pred_region
          %s851 = smul.u32 16, %s42
          %s853 = ssub.s32 2048, 2048
          %854 = vsyncadd %s828, %s853
          %s855 = smul.addr %s851, 128
          %s856 = scalar_lea.hbm %s6, %s855
          %s857 = sshll.u32 %s831, 4
          %s858 = int_to_ptr.vmem [resolvable:$true] %s857
          %863 = dma.vmem_to_hbm [thread:$0]  %s858, 2048, %s856, %s828, 128, 128, 8
        $region64: #{tpu_custom_call.1} parent=31 // pred_fallthru
          _
      $region32: #{tpu_custom_call.1} parent=5 // pred_fallthru
        _
      %p864 = scmp.le.s32.totalorder 2, %s33
      // Predicated region
      $region65: #{tpu_custom_call.1} parent=5 // pred_check
        %p865 = pneg %p864
      $region66: #{tpu_custom_call.1} parent=5 // pred_check_branch
        %867 = sbr.rel (%p865) target = $region68
      $region67: #{tpu_custom_call.1} parent=5 // pred_region
        %s868 = ssub.s32 %s33, 2
        // Predicated region
        $region69: #{tpu_custom_call.1} parent=67 // pred_check
          %p869 = pneg %p166
        $region70: #{tpu_custom_call.1} parent=67 // pred_check_branch
          %871 = sbr.rel (%p869) target = $region72
        $region71: #{tpu_custom_call.1} parent=67 // pred_region
          %s872 = sand.u32 %s151, 1
          %s873 = scalar_lea.sflag [#allocation8], %s872
          %s874 = sand.u32 %s151, 1
          %s875 = smul.addr %s874, 64
          %s876 = scalar_lea.vmem [#allocation12], %s875
          %877 = dma.done %s873, 1024
        $region72: #{tpu_custom_call.1} parent=67 // pred_fallthru
          _
        // Predicated region
        $region73: #{tpu_custom_call.1} parent=67 // pred_check
          %p878 = pneg %p192
        $region74: #{tpu_custom_call.1} parent=67 // pred_check_branch
          %880 = sbr.rel (%p878) target = $region76
        $region75: #{tpu_custom_call.1} parent=67 // pred_region
          %s881 = sand.u32 %s177, 1
          %s882 = scalar_lea.sflag [#allocation14], %s881
          %s883 = sand.u32 %s177, 1
          %s884 = smul.addr %s883, 128
          %s885 = scalar_lea.vmem [#allocation13], %s884
          %886 = dma.done %s882, 2048
        $region76: #{tpu_custom_call.1} parent=67 // pred_fallthru
          _
      $region68: #{tpu_custom_call.1} parent=5 // pred_fallthru
        _
    $region6: #{tpu_custom_call.1} parent=1 // loop_footer
      %s37 = sadd.s32 1, %s33
    $region7: #{tpu_custom_call.1} parent=1 // loop_footer_branch
      %32 = sbr.rel target = $region3
    $region8: #{tpu_custom_call.1} parent=1 // loop_exit
      _
    %887 = vsyncpa [#allocation7], 1
    %s888 = scalar_lea.sflag [#allocation7], 1
    %889 = vsyncpa %s888, 1
    %890 = vsyncpa [#allocation10], 1
    %s891 = scalar_lea.sflag [#allocation10], 1
    %892 = vsyncpa %s891, 1
    %893 = vsyncpa [#allocation8], 1
    %s894 = scalar_lea.sflag [#allocation8], 1
    %895 = vsyncpa %s894, 1
    %896 = vsyncpa [#allocation14], 1
    %s897 = scalar_lea.sflag [#allocation14], 1
    %898 = vsyncpa %s897, 1

</llo_original>
